<compile_context>
chip_gen: v5e
topology: v5e:2x2
jax: 0.10.0
libtpu: 0.0.40
codegen_flags: <defaults>
</compile_context>

<pallas_src>
import functools

import jax
import jax.numpy as jnp
from jax import lax
from jax.experimental import pallas as pl
from jax.experimental.pallas import tpu as pltpu

NEG_SLOPE = 0.3       # LeakyReLU(negative_slope=0.3)
_LANE = 128
# Cap on TILE_B*L lanes so the per-step f32 working set (~400 * lanes bytes,
# dominated by the (K3*C+1, TILE_B*L) conv3 im2col) fits the default scoped
# VMEM on v5e (16 MiB) / v6e (32 MiB) / v7x (32 MiB of 64 MiB physical).
_MAX_LANES = 16384


def _leaky(v):
    return jnp.where(v >= 0, v, NEG_SLOPE * v)


def _pick_tile_b(n, l):
    """Largest batch tile with TILE_B*L a multiple of 128 under the VMEM cap.

    Prefers keeping >=2 grid steps (both v7x TensorCores busy) as long as each
    step stays wide enough (>=2048 lanes) to amortize the ~0.35us/step grid
    overhead; on single-TC v5e/v6e the largest tile is used otherwise.
    """
    best_single = None
    best_multi = None
    for tb in range(1, n + 1):
        if n % tb:
            continue
        w = tb * l
        if w % _LANE or w > _MAX_LANES:
            continue
        best_single = tb
        if n // tb >= 2:
            best_multi = tb
    if best_multi is not None and best_multi * l >= 2048:
        return best_multi
    if best_single is not None:
        return best_single
    return n   # fallback: one step, block == full array (always legal)


def conv_block_kernel(x_ref, w1_ref, w2_ref, w3_ref, o_ref, *, K1, K3):
    x = x_ref[...]                                  # (C, W), W = TILE_B*L lanes
    w_lanes = x.shape[1]
    ones_row = jnp.ones((1, w_lanes), x.dtype)

    def conv_leaky(v, w_ref, K):
        # Segment-padded im2col: row k*C+c of `cols` is v[c] shifted left by k
        # (zero-filled tail).  Within each length-L batch segment only the
        # first L-K+1 output columns are exact; the trailing "garbage" columns
        # are never read by a *valid* column of the next conv, and the wrapper
        # keeps only valid stride-2 columns of the final output.
        rows = v.shape[0]
        vp = v if K == 1 else jnp.concatenate(
            [v, jnp.zeros((rows, K - 1), v.dtype)], axis=1)   # (rows, W+K-1)
        cols = jnp.concatenate(
            [vp[:, k:k + w_lanes] for k in range(K)] + [ones_row], axis=0)
        # ONE lane-dense MXU matmul per conv (contraction K*C+1); the bias
        # rides along as the (ones-row x bias-column) term.
        y = jnp.dot(w_ref[...], cols, preferred_element_type=jnp.float32)
        return _leaky(y)

    h1 = conv_leaky(x, w1_ref, K1)                  # (Co, W)
    h2 = conv_leaky(h1, w2_ref, K1)                 # (Co, W)
    y3 = conv_leaky(h2, w3_ref, K3)                 # (Co, W) full stride-1 conv3

    # TODO(synk): nn.Dropout is applied as inference-mode identity; training-mode
    # Bernoulli masking / 1/(1-p) scaling is not implemented.
    o_ref[...] = y3.astype(o_ref.dtype)


def conv_block(x, params, *, tile_b=None):
    """x: (N, C_in, L) float32; params = (w1,b1,w2,b2,w3,b3) in PyTorch layout."""
    w1, b1, w2, b2, w3, b3 = params
    N, Ci, L = x.shape
    Co, Ci1, K1 = w1.shape
    _, Ci3, K3 = w3.shape
    assert Ci1 == Ci and Ci3 == Co == Ci, \
        "ConvBlock forward requires in_channels == out_channels"

    L1 = L - K1 + 1
    L2 = L1 - K1 + 1
    L3 = (L2 - K3) // 2 + 1
    assert L2 >= K3, "sequence too short for conv3"

    if tile_b is None:
        tile_b = _pick_tile_b(N, L)
    assert N % tile_b == 0
    W = tile_b * L

    # Wrapper-side layout plumbing (free):
    #   * fold batch onto lanes: (N, C, L) -> (C, N*L), batch-major.
    #   * flatten weights k-major (matching the im2col row order) and append
    #     the bias as a trailing column (fused bias).
    x2d = jnp.transpose(x, (1, 0, 2)).reshape(Ci, N * L)

    def flat_w(w, b):
        co, ci, k = w.shape
        wf = jnp.transpose(w, (0, 2, 1)).reshape(co, k * ci)
        return jnp.concatenate([wf, b.reshape(co, 1)], axis=1)

    w1a = flat_w(w1, b1)                            # (Co, K1*Ci + 1)
    w2a = flat_w(w2, b2)                            # (Co, K1*Co + 1)
    w3a = flat_w(w3, b3)                            # (Co, K3*Co + 1)

    kernel = functools.partial(conv_block_kernel, K1=K1, K3=K3)

    y2d = pl.pallas_call(
        kernel,
        out_shape=jax.ShapeDtypeStruct((Co, N * L), x.dtype),
        grid=(N // tile_b,),
        in_specs=[
            pl.BlockSpec((Ci, W), lambda i: (0, i)),             # x slab
            pl.BlockSpec((Co, K1 * Ci + 1), lambda i: (0, 0)),   # w1|b1 (resident)
            pl.BlockSpec((Co, K1 * Co + 1), lambda i: (0, 0)),   # w2|b2 (resident)
            pl.BlockSpec((Co, K3 * Co + 1), lambda i: (0, 0)),   # w3|b3 (resident)
        ],
        out_specs=pl.BlockSpec((Co, W), lambda i: (0, i)),       # lane-dense
        compiler_params=pltpu.CompilerParams(
            dimension_semantics=("parallel",)),
    )(x2d, w1a, w2a, w3a)

    # Free XLA post-plumbing: unfold batch, keep the stride-2 valid conv3
    # columns, return PyTorch layout (N, Co, L3).
    y = y2d.reshape(Co, N, L).transpose(1, 0, 2)                 # (N, Co, L)
    return y[:, :, : 2 * L3 : 2]


def _reference(x, params):
    """Pure-JAX reference matching the PyTorch forward (eval mode)."""
    w1, b1, w2, b2, w3, b3 = params

    def conv1d(v, w, b, stride=1):
        y = lax.conv_general_dilated(v, w, (stride,), 'VALID',
                                     dimension_numbers=('NCH', 'OIH', 'NCH'))
        return y + b[None, :, None]

    r = _leaky(conv1d(x, w1, b1))
    r = _leaky(conv1d(r, w2, b2))
    r = _leaky(conv1d(r, w3, b3, stride=2))
    return r  # dropout = identity in eval


if __name__ == "__main__":
    # Small shapes consistent with the module: conv3 needs in_ch == out_ch and
    # the sequence must survive two valid K=3 convs plus a valid K=24 conv.
    N, C, L = 2, 4, 64
    K1, K3 = 3, 24

    key = jax.random.PRNGKey(0)
    ks = jax.random.split(key, 7)

    def uinit(k, shape, fan_in):
        bound = 1.0 / jnp.sqrt(jnp.float32(fan_in))
        return jax.random.uniform(k, shape, jnp.float32, -bound, bound)

    # PyTorch-style deterministic init (uniform in +/- 1/sqrt(fan_in)).
    w1 = uinit(ks[0], (C, C, K1), C * K1)
    b1 = uinit(ks[1], (C,), C * K1)
    w2 = uinit(ks[2], (C, C, K1), C * K1)
    b2 = uinit(ks[3], (C,), C * K1)
    w3 = uinit(ks[4], (C, C, K3), C * K3)
    b3 = uinit(ks[5], (C,), C * K3)
    x = jax.random.normal(ks[6], (N, C, L), jnp.float32)

    params = (w1, b1, w2, b2, w3, b3)

    y = conv_block(x, params)
    y = jax.block_until_ready(y)

    y_ref = _reference(x, params)
    assert y.shape == y_ref.shape, (y.shape, y_ref.shape)
    assert jnp.allclose(y, y_ref, atol=2e-4, rtol=2e-4), "mismatch vs reference"

    print("KERNEL_OK")
</pallas_src>

<mosaic_0001>
module attributes {stable_mosaic.version = 11 : i64} {
  func.func @conv_block_kernel(%arg0: i32, %arg1: memref<4x128xf32, #tpu.memory_space<vmem>>, %arg2: memref<4x13xf32, #tpu.memory_space<vmem>>, %arg3: memref<4x13xf32, #tpu.memory_space<vmem>>, %arg4: memref<4x97xf32, #tpu.memory_space<vmem>>, %arg5: memref<4x128xf32, #tpu.memory_space<vmem>>) attributes {dimension_semantics = [#tpu.dimension_semantics<parallel>], iteration_bounds = array<i64: 1>, scalar_prefetch = 0 : i64, scratch_operands = 0 : i64, tpu.core_type = #tpu.core_type<tc>, window_params = [{transform_indices = @transform_0, window_bounds = array<i64: 4, 128>}, {pipeline_mode = #tpu.pipeline_mode<synchronous>, transform_indices = @transform_1, window_bounds = array<i64: 4, 13>}, {pipeline_mode = #tpu.pipeline_mode<synchronous>, transform_indices = @transform_2, window_bounds = array<i64: 4, 13>}, {pipeline_mode = #tpu.pipeline_mode<synchronous>, transform_indices = @transform_3, window_bounds = array<i64: 4, 97>}, {transform_indices = @transform_4, window_bounds = array<i64: 4, 128>}]} {
    %c0 = arith.constant 0 : index
    %c0_0 = arith.constant 0 : index
    %0 = vector.load %arg1[%c0, %c0_0] : memref<4x128xf32, #tpu.memory_space<vmem>>, vector<4x128xf32>
    %cst = arith.constant 1.000000e+00 : f32
    %1 = vector.broadcast %cst : f32 to vector<1x128xf32>
    %cst_1 = arith.constant 0.000000e+00 : f32
    %2 = vector.broadcast %cst_1 : f32 to vector<4x2xf32>
    %3 = tpu.concatenate %0, %2 in 1 : vector<4x128xf32>, vector<4x2xf32> -> vector<4x130xf32>
    %4 = vector.extract_strided_slice %3 {offsets = [0, 0], sizes = [4, 128], strides = [1, 1]} : vector<4x130xf32> to vector<4x128xf32>
    %5 = vector.extract_strided_slice %3 {offsets = [0, 1], sizes = [4, 128], strides = [1, 1]} : vector<4x130xf32> to vector<4x128xf32>
    %6 = vector.extract_strided_slice %3 {offsets = [0, 2], sizes = [4, 128], strides = [1, 1]} : vector<4x130xf32> to vector<4x128xf32>
    %7 = tpu.concatenate %4, %5, %6, %1 in 0 : vector<4x128xf32>, vector<4x128xf32>, vector<4x128xf32>, vector<1x128xf32> -> vector<13x128xf32>
    %c0_2 = arith.constant 0 : index
    %c0_3 = arith.constant 0 : index
    %8 = vector.load %arg2[%c0_2, %c0_3] : memref<4x13xf32, #tpu.memory_space<vmem>>, vector<4x13xf32>
    %cst_4 = arith.constant dense<0.000000e+00> : vector<4x128xf32>
    %9 = tpu.matmul %8, %7, %cst_4 {dimension_numbers = #tpu.dot_dimension_numbers<[1], [0], [0], [1], [0, 0, 1, 1], [], []>} : vector<4x13xf32>, vector<13x128xf32>, vector<4x128xf32> -> vector<4x128xf32>
    %cst_5 = arith.constant 0.000000e+00 : f32
    %10 = vector.broadcast %cst_5 : f32 to vector<4x128xf32>
    %11 = arith.cmpf oge, %9, %10 : vector<4x128xf32>
    %cst_6 = arith.constant 3.000000e-01 : f32
    %12 = vector.broadcast %cst_6 : f32 to vector<4x128xf32>
    %13 = arith.mulf %12, %9 : vector<4x128xf32>
    %14 = arith.select %11, %9, %13 : vector<4x128xi1>, vector<4x128xf32>
    %cst_7 = arith.constant 0.000000e+00 : f32
    %15 = vector.broadcast %cst_7 : f32 to vector<4x2xf32>
    %16 = tpu.concatenate %14, %15 in 1 : vector<4x128xf32>, vector<4x2xf32> -> vector<4x130xf32>
    %17 = vector.extract_strided_slice %16 {offsets = [0, 0], sizes = [4, 128], strides = [1, 1]} : vector<4x130xf32> to vector<4x128xf32>
    %18 = vector.extract_strided_slice %16 {offsets = [0, 1], sizes = [4, 128], strides = [1, 1]} : vector<4x130xf32> to vector<4x128xf32>
    %19 = vector.extract_strided_slice %16 {offsets = [0, 2], sizes = [4, 128], strides = [1, 1]} : vector<4x130xf32> to vector<4x128xf32>
    %20 = tpu.concatenate %17, %18, %19, %1 in 0 : vector<4x128xf32>, vector<4x128xf32>, vector<4x128xf32>, vector<1x128xf32> -> vector<13x128xf32>
    %c0_8 = arith.constant 0 : index
    %c0_9 = arith.constant 0 : index
    %21 = vector.load %arg3[%c0_8, %c0_9] : memref<4x13xf32, #tpu.memory_space<vmem>>, vector<4x13xf32>
    %cst_10 = arith.constant dense<0.000000e+00> : vector<4x128xf32>
    %22 = tpu.matmul %21, %20, %cst_10 {dimension_numbers = #tpu.dot_dimension_numbers<[1], [0], [0], [1], [0, 0, 1, 1], [], []>} : vector<4x13xf32>, vector<13x128xf32>, vector<4x128xf32> -> vector<4x128xf32>
    %cst_11 = arith.constant 0.000000e+00 : f32
    %23 = vector.broadcast %cst_11 : f32 to vector<4x128xf32>
    %24 = arith.cmpf oge, %22, %23 : vector<4x128xf32>
    %cst_12 = arith.constant 3.000000e-01 : f32
    %25 = vector.broadcast %cst_12 : f32 to vector<4x128xf32>
    %26 = arith.mulf %25, %22 : vector<4x128xf32>
    %27 = arith.select %24, %22, %26 : vector<4x128xi1>, vector<4x128xf32>
    %cst_13 = arith.constant 0.000000e+00 : f32
    %28 = vector.broadcast %cst_13 : f32 to vector<4x23xf32>
    %29 = tpu.concatenate %27, %28 in 1 : vector<4x128xf32>, vector<4x23xf32> -> vector<4x151xf32>
    %30 = vector.extract_strided_slice %29 {offsets = [0, 0], sizes = [4, 128], strides = [1, 1]} : vector<4x151xf32> to vector<4x128xf32>
    %31 = vector.extract_strided_slice %29 {offsets = [0, 1], sizes = [4, 128], strides = [1, 1]} : vector<4x151xf32> to vector<4x128xf32>
    %32 = vector.extract_strided_slice %29 {offsets = [0, 2], sizes = [4, 128], strides = [1, 1]} : vector<4x151xf32> to vector<4x128xf32>
    %33 = vector.extract_strided_slice %29 {offsets = [0, 3], sizes = [4, 128], strides = [1, 1]} : vector<4x151xf32> to vector<4x128xf32>
    %34 = vector.extract_strided_slice %29 {offsets = [0, 4], sizes = [4, 128], strides = [1, 1]} : vector<4x151xf32> to vector<4x128xf32>
    %35 = vector.extract_strided_slice %29 {offsets = [0, 5], sizes = [4, 128], strides = [1, 1]} : vector<4x151xf32> to vector<4x128xf32>
    %36 = vector.extract_strided_slice %29 {offsets = [0, 6], sizes = [4, 128], strides = [1, 1]} : vector<4x151xf32> to vector<4x128xf32>
    %37 = vector.extract_strided_slice %29 {offsets = [0, 7], sizes = [4, 128], strides = [1, 1]} : vector<4x151xf32> to vector<4x128xf32>
    %38 = vector.extract_strided_slice %29 {offsets = [0, 8], sizes = [4, 128], strides = [1, 1]} : vector<4x151xf32> to vector<4x128xf32>
    %39 = vector.extract_strided_slice %29 {offsets = [0, 9], sizes = [4, 128], strides = [1, 1]} : vector<4x151xf32> to vector<4x128xf32>
    %40 = vector.extract_strided_slice %29 {offsets = [0, 10], sizes = [4, 128], strides = [1, 1]} : vector<4x151xf32> to vector<4x128xf32>
    %41 = vector.extract_strided_slice %29 {offsets = [0, 11], sizes = [4, 128], strides = [1, 1]} : vector<4x151xf32> to vector<4x128xf32>
    %42 = vector.extract_strided_slice %29 {offsets = [0, 12], sizes = [4, 128], strides = [1, 1]} : vector<4x151xf32> to vector<4x128xf32>
    %43 = vector.extract_strided_slice %29 {offsets = [0, 13], sizes = [4, 128], strides = [1, 1]} : vector<4x151xf32> to vector<4x128xf32>
    %44 = vector.extract_strided_slice %29 {offsets = [0, 14], sizes = [4, 128], strides = [1, 1]} : vector<4x151xf32> to vector<4x128xf32>
    %45 = vector.extract_strided_slice %29 {offsets = [0, 15], sizes = [4, 128], strides = [1, 1]} : vector<4x151xf32> to vector<4x128xf32>
    %46 = vector.extract_strided_slice %29 {offsets = [0, 16], sizes = [4, 128], strides = [1, 1]} : vector<4x151xf32> to vector<4x128xf32>
    %47 = vector.extract_strided_slice %29 {offsets = [0, 17], sizes = [4, 128], strides = [1, 1]} : vector<4x151xf32> to vector<4x128xf32>
    %48 = vector.extract_strided_slice %29 {offsets = [0, 18], sizes = [4, 128], strides = [1, 1]} : vector<4x151xf32> to vector<4x128xf32>
    %49 = vector.extract_strided_slice %29 {offsets = [0, 19], sizes = [4, 128], strides = [1, 1]} : vector<4x151xf32> to vector<4x128xf32>
    %50 = vector.extract_strided_slice %29 {offsets = [0, 20], sizes = [4, 128], strides = [1, 1]} : vector<4x151xf32> to vector<4x128xf32>
    %51 = vector.extract_strided_slice %29 {offsets = [0, 21], sizes = [4, 128], strides = [1, 1]} : vector<4x151xf32> to vector<4x128xf32>
    %52 = vector.extract_strided_slice %29 {offsets = [0, 22], sizes = [4, 128], strides = [1, 1]} : vector<4x151xf32> to vector<4x128xf32>
    %53 = vector.extract_strided_slice %29 {offsets = [0, 23], sizes = [4, 128], strides = [1, 1]} : vector<4x151xf32> to vector<4x128xf32>
    %54 = tpu.concatenate %30, %31, %32, %33, %34, %35, %36, %37, %38, %39, %40, %41, %42, %43, %44, %45 in 0 : vector<4x128xf32>, vector<4x128xf32>, vector<4x128xf32>, vector<4x128xf32>, vector<4x128xf32>, vector<4x128xf32>, vector<4x128xf32>, vector<4x128xf32>, vector<4x128xf32>, vector<4x128xf32>, vector<4x128xf32>, vector<4x128xf32>, vector<4x128xf32>, vector<4x128xf32>, vector<4x128xf32>, vector<4x128xf32> -> vector<64x128xf32>
    %55 = tpu.concatenate %46, %47, %48, %49, %50, %51, %52, %53, %1 in 0 : vector<4x128xf32>, vector<4x128xf32>, vector<4x128xf32>, vector<4x128xf32>, vector<4x128xf32>, vector<4x128xf32>, vector<4x128xf32>, vector<4x128xf32>, vector<1x128xf32> -> vector<33x128xf32>
    %56 = tpu.concatenate %54, %55 in 0 : vector<64x128xf32>, vector<33x128xf32> -> vector<97x128xf32>
    %c0_14 = arith.constant 0 : index
    %c0_15 = arith.constant 0 : index
    %57 = vector.load %arg4[%c0_14, %c0_15] : memref<4x97xf32, #tpu.memory_space<vmem>>, vector<4x97xf32>
    %cst_16 = arith.constant dense<0.000000e+00> : vector<4x128xf32>
    %58 = tpu.matmul %57, %56, %cst_16 {dimension_numbers = #tpu.dot_dimension_numbers<[1], [0], [0], [1], [0, 0, 1, 1], [], []>} : vector<4x97xf32>, vector<97x128xf32>, vector<4x128xf32> -> vector<4x128xf32>
    %cst_17 = arith.constant 0.000000e+00 : f32
    %59 = vector.broadcast %cst_17 : f32 to vector<4x128xf32>
    %60 = arith.cmpf oge, %58, %59 : vector<4x128xf32>
    %cst_18 = arith.constant 3.000000e-01 : f32
    %61 = vector.broadcast %cst_18 : f32 to vector<4x128xf32>
    %62 = arith.mulf %61, %58 : vector<4x128xf32>
    %63 = arith.select %60, %58, %62 : vector<4x128xi1>, vector<4x128xf32>
    %c0_19 = arith.constant 0 : index
    %c0_20 = arith.constant 0 : index
    %64 = vector.load %arg5[%c0_19, %c0_20] : memref<4x128xf32, #tpu.memory_space<vmem>>, vector<4x128xf32>
    tpu.vector_store %arg5[%c0_19, %c0_20], %63 {strides = array<i32>} : memref<4x128xf32, #tpu.memory_space<vmem>>, vector<4x128xf32>,
    return
  }
  func.func @transform_0(%arg0: i32) -> (i32, i32) {
    %c0_i32 = arith.constant 0 : i32
    %c0_i32_0 = arith.constant 0 : i32
    return %c0_i32, %arg0 : i32, i32
  }
  func.func @transform_1(%arg0: i32) -> (i32, i32) {
    %c0_i32 = arith.constant 0 : i32
    %c0_i32_0 = arith.constant 0 : i32
    %c0_i32_1 = arith.constant 0 : i32
    return %c0_i32, %c0_i32_0 : i32, i32
  }
  func.func @transform_2(%arg0: i32) -> (i32, i32) {
    %c0_i32 = arith.constant 0 : i32
    %c0_i32_0 = arith.constant 0 : i32
    %c0_i32_1 = arith.constant 0 : i32
    return %c0_i32, %c0_i32_0 : i32, i32
  }
  func.func @transform_3(%arg0: i32) -> (i32, i32) {
    %c0_i32 = arith.constant 0 : i32
    %c0_i32_0 = arith.constant 0 : i32
    %c0_i32_1 = arith.constant 0 : i32
    return %c0_i32, %c0_i32_0 : i32, i32
  }
  func.func @transform_4(%arg0: i32) -> (i32, i32) {
    %c0_i32 = arith.constant 0 : i32
    %c0_i32_0 = arith.constant 0 : i32
    return %c0_i32, %arg0 : i32, i32
  }
}

</mosaic_0001>

<llo_original>
// kernel: tpu_custom_call.1
$region0: #{tpu_custom_call.1}
  #allocation0 [shape = 'u32[]', space=smem, size = 0x4, offset = 0x4, fixed_abs, tag = 'smem constant byte address 0x4 - core index']
  #allocation1 [shape = 'u32[72,128]{1,0:T(1,128)}', space=vmem, size = 0x9000, scoped, tag = 'internal scratch']
  %s0 = inlined_call_operand.hbm [shape: f32[4,128], index: 0, kind: input, shape index: {}]
  %s1 = inlined_call_operand.hbm [shape: f32[4,13], index: 1, kind: input, shape index: {}]
  %s2 = inlined_call_operand.hbm [shape: f32[4,13], index: 2, kind: input, shape index: {}]
  %s3 = inlined_call_operand.hbm [shape: f32[4,97], index: 3, kind: input, shape index: {}]
  %s4 = inlined_call_operand.hbm [shape: f32[4,128], index: 4, kind: output, shape index: {}]
  %s5 = sld [smem:[#allocation0]]
  $region42: #{tpu_custom_call.1} parent=0
    _
  %s7 = ssub.s32 1, %s5
  %s8 = scalar_select 0, %s7, %s5
  $region1: #{tpu_custom_call.1} parent=0
    #allocation2 [shape = 'u8[2048]{0}', space=vmem, size = 0x800, scoped, tag = 'input window, operand 0, single buffered']
    #allocation3 [shape = 's32[1]{0}', space=sflag, size = 0x4, scoped, tag = 'scoped memory for tpu_custom_call.1']
    #allocation4 [shape = 's32[1]{0}', space=sflag, size = 0x4, scoped, tag = 'scoped memory for tpu_custom_call.1']
    #allocation5 [shape = 'u8[2048]{0}', space=vmem, size = 0x800, scoped, tag = 'input window, operand 1, single buffered']
    #allocation6 [shape = 's32[1]{0}', space=sflag, size = 0x4, scoped, tag = 'scoped memory for tpu_custom_call.1']
    #allocation7 [shape = 'u8[2048]{0}', space=vmem, size = 0x800, scoped, tag = 'input window, operand 2, single buffered']
    #allocation8 [shape = 'u8[2048]{0}', space=vmem, size = 0x800, scoped, tag = 'input window, operand 3, single buffered']
    #allocation9 [shape = 's32[1]{0}', space=sflag, size = 0x4, scoped, tag = 'scoped memory for tpu_custom_call.1']
    #allocation10 [shape = 'u8[2048]{0}', space=vmem, size = 0x800, scoped, tag = 'output window, operand 0, single buffered']
    %9 = vsyncpa [#allocation3], 0
    %10 = vsyncpa [#allocation6], 0
    %11 = vsyncpa [#allocation9], 0
    %12 = vsyncpa [#allocation4], 0
    // Predicated region
    $region2: #{tpu_custom_call.1} parent=1 // pred_check
      _
    $region3: #{tpu_custom_call.1} parent=1 // pred_check_branch
      %14 = sbr.rel (0) target = $region5
    $region4: #{tpu_custom_call.1} parent=1 // pred_region
      %16 = vsyncadd [#allocation3], 0
      %s18 = sshll.u32 %s0, 4
      %s19 = int_to_ptr.hbm [resolvable:$true] %s18
      %s20 = sshll.u32 [#allocation2], 4
      %s21 = int_to_ptr.vmem [resolvable:$true] %s20
      %23 = dma.hbm_to_vmem [thread:$0]  %s19, 64, %s21, [#allocation3]
    $region5: #{tpu_custom_call.1} parent=1 // pred_fallthru
      _
    // Predicated region
    $region6: #{tpu_custom_call.1} parent=1 // pred_check
      _
    $region7: #{tpu_custom_call.1} parent=1 // pred_check_branch
      %25 = sbr.rel (0) target = $region9
    $region8: #{tpu_custom_call.1} parent=1 // pred_region
      %27 = vsyncadd [#allocation6], 0
      %s29 = sshll.u32 %s1, 4
      %s30 = int_to_ptr.hbm [resolvable:$true] %s29
      %s31 = sshll.u32 [#allocation5], 4
      %s32 = int_to_ptr.vmem [resolvable:$true] %s31
      %34 = dma.hbm_to_vmem [thread:$0]  %s30, 64, %s32, [#allocation6]
    $region9: #{tpu_custom_call.1} parent=1 // pred_fallthru
      _
    // Predicated region
    $region10: #{tpu_custom_call.1} parent=1 // pred_check
      _
    $region11: #{tpu_custom_call.1} parent=1 // pred_check_branch
      %36 = sbr.rel (0) target = $region13
    $region12: #{tpu_custom_call.1} parent=1 // pred_region
      %38 = vsyncadd [#allocation6], 0
      %s40 = sshll.u32 %s2, 4
      %s41 = int_to_ptr.hbm [resolvable:$true] %s40
      %s42 = sshll.u32 [#allocation7], 4
      %s43 = int_to_ptr.vmem [resolvable:$true] %s42
      %45 = dma.hbm_to_vmem [thread:$0]  %s41, 64, %s43, [#allocation6]
    $region13: #{tpu_custom_call.1} parent=1 // pred_fallthru
      _
    // Predicated region
    $region14: #{tpu_custom_call.1} parent=1 // pred_check
      _
    $region15: #{tpu_custom_call.1} parent=1 // pred_check_branch
      %47 = sbr.rel (0) target = $region17
    $region16: #{tpu_custom_call.1} parent=1 // pred_region
      %49 = vsyncadd [#allocation9], 0
      %s51 = sshll.u32 %s3, 4
      %s52 = int_to_ptr.hbm [resolvable:$true] %s51
      %s53 = sshll.u32 [#allocation8], 4
      %s54 = int_to_ptr.vmem [resolvable:$true] %s53
      %56 = dma.hbm_to_vmem [thread:$0]  %s52, 64, %s54, [#allocation9]
    $region17: #{tpu_custom_call.1} parent=1 // pred_fallthru
      _
    // Predicated region
    $region18: #{tpu_custom_call.1} parent=1 // pred_check
      _
    $region19: #{tpu_custom_call.1} parent=1 // pred_check_branch
      %58 = sbr.rel (0) target = $region21
    $region20: #{tpu_custom_call.1} parent=1 // pred_region
      %60 = dma.done [#allocation3], 64
    $region21: #{tpu_custom_call.1} parent=1 // pred_fallthru
      _
    // Predicated region
    $region22: #{tpu_custom_call.1} parent=1 // pred_check
      _
    $region23: #{tpu_custom_call.1} parent=1 // pred_check_branch
      %62 = sbr.rel (0) target = $region25
    $region24: #{tpu_custom_call.1} parent=1 // pred_region
      %64 = dma.done [#allocation6], 64
    $region25: #{tpu_custom_call.1} parent=1 // pred_fallthru
      _
    // Predicated region
    $region26: #{tpu_custom_call.1} parent=1 // pred_check
      _
    $region27: #{tpu_custom_call.1} parent=1 // pred_check_branch
      %66 = sbr.rel (0) target = $region29
    $region28: #{tpu_custom_call.1} parent=1 // pred_region
      %68 = dma.done [#allocation6], 64
    $region29: #{tpu_custom_call.1} parent=1 // pred_fallthru
      _
    // Predicated region
    $region30: #{tpu_custom_call.1} parent=1 // pred_check
      _
    $region31: #{tpu_custom_call.1} parent=1 // pred_check_branch
      %70 = sbr.rel (0) target = $region33
    $region32: #{tpu_custom_call.1} parent=1 // pred_region
      %72 = dma.done [#allocation9], 64
    $region33: #{tpu_custom_call.1} parent=1 // pred_fallthru
      _
    %v73 = vld [vmem:[#allocation2] sm:$0xf]
    %v76 = vrot.slane %v73, 4
    %v77 = vrot.slane 0.0, 4
    %78 = vrot.lane.b32.xlu0 %v76, 127
    %v79 = vpop.permute.xlu0 %78
    %80 = vrot.lane.b32.xlu0 %v77, 127
    %v81 = vpop.permute.xlu0 %80
    %vm82 = vcmask 1039360
    %v83 = vsel %vm82, %v79, %v81
    %85 = vrot.lane.b32.xlu0 %v73, 126
    %v86 = vpop.permute.xlu0 %85
    %87 = vrot.lane.b32.xlu0 0.0, 126
    %v88 = vpop.permute.xlu0 %87
    %vm89 = vcmask 1031168
    %v90 = vsel %vm89, %v86, %v88
    %vm92 = vcmask 1043456
    %v93 = vsel %vm92, %v73, %v83
    %v94 = vsel %vm92, %v90, 1.0
    %v95 = vld [vmem:[#allocation5] sm:$0xf]
    %vm96 = vcmask 105472
    %v98 = vsel %vm96, %v95, 0
    %vm100 = vcmask 1044480
    %v102 = vsel %vm100, %v94, 0
    %104 = vmatpush.msra.mxu0 0.0
    %105 = vmatpush.msra.mxu0 0.0
    %106 = vmatpush.msra.mxu0 0.0
    %107 = vmatpush.msra.mxu0 0.0
    %108 = vmatpush.msra.mxu0 0.0
    %109 = vmatpush.msra.mxu0 0.0
    %110 = vmatpush.msra.mxu0 0.0
    %111 = vmatpush.msra.mxu0 0.0
    %112 = vmatpush.msra.mxu0 0.0
    %113 = vmatpush.msra.mxu0 0.0
    %114 = vmatpush.msra.mxu0 0.0
    %115 = vmatpush.msra.mxu0 0.0
    %116 = vmatpush.msra.mxu0 0.0
    %117 = vmatpush.msra.mxu0 0.0
    %118 = vmatpush.msra.mxu0 %v102
    %119 = vmatpush.msra.mxu0 %v93
    %120 = vmatmul.f32.gmra.mxu0 %v98
    %v121 = vpop.f32.mrf.mxu0
    %v122 = vadd.f32 0.0, %v121
    %123 = vdwg.mxu0
    %vm124 = vcmp.ge.f32.partialorder %v122, 0.0
    %v125 = vmul.f32 %v122, 0.3
    %v126 = vsel %vm124, %v122, %v125
    %v128 = vrot.slane %v126, 4
    %129 = vrot.lane.b32.xlu0 %v128, 127
    %v130 = vpop.permute.xlu0 %129
    %v131 = vsel %vm82, %v130, %v81
    %133 = vrot.lane.b32.xlu0 %v126, 126
    %v134 = vpop.permute.xlu0 %133
    %v135 = vsel %vm89, %v134, %v88
    %v137 = vsel %vm92, %v126, %v131
    %v138 = vsel %vm92, %v135, 1.0
    %v139 = vld [vmem:[#allocation7] sm:$0xf]
    %v141 = vsel %vm96, %v139, 0
    %v144 = vsel %vm100, %v138, 0
    %146 = vmatpush.msra.mxu0 0.0
    %147 = vmatpush.msra.mxu0 0.0
    %148 = vmatpush.msra.mxu0 0.0
    %149 = vmatpush.msra.mxu0 0.0
    %150 = vmatpush.msra.mxu0 0.0
    %151 = vmatpush.msra.mxu0 0.0
    %152 = vmatpush.msra.mxu0 0.0
    %153 = vmatpush.msra.mxu0 0.0
    %154 = vmatpush.msra.mxu0 0.0
    %155 = vmatpush.msra.mxu0 0.0
    %156 = vmatpush.msra.mxu0 0.0
    %157 = vmatpush.msra.mxu0 0.0
    %158 = vmatpush.msra.mxu0 0.0
    %159 = vmatpush.msra.mxu0 0.0
    %160 = vmatpush.msra.mxu0 %v144
    %161 = vmatpush.msra.mxu0 %v137
    %162 = vmatmul.f32.gmra.mxu0 %v141
    %v163 = vpop.f32.mrf.mxu0
    %v164 = vadd.f32 0.0, %v163
    %165 = vdwg.mxu0
    %vm166 = vcmp.ge.f32.partialorder %v164, 0.0
    %v167 = vmul.f32 %v164, 0.3
    %v168 = vsel %vm166, %v164, %v167
    %v170 = vrot.slane %v168, 4
    %171 = vrot.lane.b32.xlu0 %v170, 127
    %v172 = vpop.permute.xlu0 %171
    %v173 = vsel %vm82, %v172, %v81
    %175 = vrot.lane.b32.xlu0 %v168, 126
    %v176 = vpop.permute.xlu0 %175
    %v177 = vsel %vm89, %v176, %v88
    %179 = vrot.lane.b32.xlu0 %v170, 125
    %v180 = vpop.permute.xlu0 %179
    %181 = vrot.lane.b32.xlu0 %v77, 125
    %v182 = vpop.permute.xlu0 %181
    %vm183 = vcmask 1022976
    %v184 = vsel %vm183, %v180, %v182
    %186 = vrot.lane.b32.xlu0 %v168, 124
    %v187 = vpop.permute.xlu0 %186
    %188 = vrot.lane.b32.xlu0 0.0, 124
    %v189 = vpop.permute.xlu0 %188
    %vm190 = vcmask 1014784
    %v191 = vsel %vm190, %v187, %v189
    %193 = vrot.lane.b32.xlu0 %v170, 123
    %v194 = vpop.permute.xlu0 %193
    %195 = vrot.lane.b32.xlu0 %v77, 123
    %v196 = vpop.permute.xlu0 %195
    %vm197 = vcmask 1006592
    %v198 = vsel %vm197, %v194, %v196
    %200 = vrot.lane.b32.xlu0 %v168, 122
    %v201 = vpop.permute.xlu0 %200
    %202 = vrot.lane.b32.xlu0 0.0, 122
    %v203 = vpop.permute.xlu0 %202
    %vm204 = vcmask 998400
    %v205 = vsel %vm204, %v201, %v203
    %207 = vrot.lane.b32.xlu0 %v170, 121
    %v208 = vpop.permute.xlu0 %207
    %209 = vrot.lane.b32.xlu0 %v77, 121
    %v210 = vpop.permute.xlu0 %209
    %vm211 = vcmask 990208
    %v212 = vsel %vm211, %v208, %v210
    %214 = vrot.lane.b32.xlu0 %v168, 120
    %v215 = vpop.permute.xlu0 %214
    %216 = vrot.lane.b32.xlu0 0.0, 120
    %v217 = vpop.permute.xlu0 %216
    %vm218 = vcmask 982016
    %v219 = vsel %vm218, %v215, %v217
    %221 = vrot.lane.b32.xlu0 %v170, 119
    %v222 = vpop.permute.xlu0 %221
    %223 = vrot.lane.b32.xlu0 %v77, 119
    %v224 = vpop.permute.xlu0 %223
    %vm225 = vcmask 973824
    %v226 = vsel %vm225, %v222, %v224
    %228 = vrot.lane.b32.xlu0 %v168, 118
    %v229 = vpop.permute.xlu0 %228
    %230 = vrot.lane.b32.xlu0 0.0, 118
    %v231 = vpop.permute.xlu0 %230
    %vm232 = vcmask 965632
    %v233 = vsel %vm232, %v229, %v231
    %235 = vrot.lane.b32.xlu0 %v170, 117
    %v236 = vpop.permute.xlu0 %235
    %237 = vrot.lane.b32.xlu0 %v77, 117
    %v238 = vpop.permute.xlu0 %237
    %vm239 = vcmask 957440
    %v240 = vsel %vm239, %v236, %v238
    %242 = vrot.lane.b32.xlu0 %v168, 116
    %v243 = vpop.permute.xlu0 %242
    %244 = vrot.lane.b32.xlu0 0.0, 116
    %v245 = vpop.permute.xlu0 %244
    %vm246 = vcmask 949248
    %v247 = vsel %vm246, %v243, %v245
    %249 = vrot.lane.b32.xlu0 %v170, 115
    %v250 = vpop.permute.xlu0 %249
    %251 = vrot.lane.b32.xlu0 %v77, 115
    %v252 = vpop.permute.xlu0 %251
    %vm253 = vcmask 941056
    %v254 = vsel %vm253, %v250, %v252
    %256 = vrot.lane.b32.xlu0 %v168, 114
    %v257 = vpop.permute.xlu0 %256
    %258 = vrot.lane.b32.xlu0 0.0, 114
    %v259 = vpop.permute.xlu0 %258
    %vm260 = vcmask 932864
    %v261 = vsel %vm260, %v257, %v259
    %263 = vrot.lane.b32.xlu0 %v170, 113
    %v264 = vpop.permute.xlu0 %263
    %265 = vrot.lane.b32.xlu0 %v77, 113
    %v266 = vpop.permute.xlu0 %265
    %vm267 = vcmask 924672
    %v268 = vsel %vm267, %v264, %v266
    %v270 = vsel %vm92, %v168, %v173
    %v271 = vsel %vm92, %v177, %v184
    %v272 = vsel %vm92, %v191, %v198
    %v273 = vsel %vm92, %v205, %v212
    %v274 = vsel %vm92, %v219, %v226
    %v275 = vsel %vm92, %v233, %v240
    %v276 = vsel %vm92, %v247, %v254
    %v277 = vsel %vm92, %v261, %v268
    %v285 = vsel %vm92, 0.0, %v81
    %v286 = vsel %vm92, %v88, %v182
    %v287 = vsel %vm92, %v189, %v196
    %v288 = vsel %vm92, %v203, %v210
    %298 = vrot.lane.b32.xlu0 %v270, 112
    %v299 = vpop.permute.xlu0 %298
    %300 = vrot.lane.b32.xlu0 %v285, 112
    %v301 = vpop.permute.xlu0 %300
    %302 = vrot.lane.b32.xlu0 %v271, 112
    %v303 = vpop.permute.xlu0 %302
    %304 = vrot.lane.b32.xlu0 %v286, 112
    %v305 = vpop.permute.xlu0 %304
    %306 = vrot.lane.b32.xlu0 %v272, 112
    %v307 = vpop.permute.xlu0 %306
    %308 = vrot.lane.b32.xlu0 %v287, 112
    %v309 = vpop.permute.xlu0 %308
    %310 = vrot.lane.b32.xlu0 %v273, 112
    %v311 = vpop.permute.xlu0 %310
    %312 = vrot.lane.b32.xlu0 %v288, 112
    %v313 = vpop.permute.xlu0 %312
    %314 = vrot.lane.b32.xlu0 1.0, 112
    %v315 = vpop.permute.xlu0 %314
    %vm316 = vcmask 916480
    %v317 = vsel %vm316, %v299, %v301
    %v318 = vsel %vm316, %v303, %v305
    %v319 = vsel %vm316, %v307, %v309
    %v320 = vsel %vm316, %v311, %v313
    %v325 = vld [vmem:[#allocation8] sm:$0xf]
    %vm326 = vcmask 793600
    %v328 = vsel %vm326, %v325, 0
    %vm330 = vcmask 1040384
    %v331 = vsel %vm330, %v315, 0
    %333 = vmatpush.msra.mxu0 0.0
    %334 = vmatpush.msra.mxu0 0.0
    %335 = vmatpush.msra.mxu0 0.0
    %336 = vmatpush.msra.mxu0 %v331
    %337 = vmatpush.msra.mxu0 %v320
    %338 = vmatpush.msra.mxu0 %v319
    %339 = vmatpush.msra.mxu0 %v318
    %340 = vmatpush.msra.mxu0 %v317
    %341 = vmatpush.msra.mxu0 %v277
    %342 = vmatpush.msra.mxu0 %v276
    %343 = vmatpush.msra.mxu0 %v275
    %344 = vmatpush.msra.mxu0 %v274
    %345 = vmatpush.msra.mxu0 %v273
    %346 = vmatpush.msra.mxu0 %v272
    %347 = vmatpush.msra.mxu0 %v271
    %348 = vmatpush.msra.mxu0 %v270
    %349 = vmatmul.f32.gmra.mxu0 %v328
    %v350 = vpop.f32.mrf.mxu0
    %v351 = vadd.f32 0.0, %v350
    %352 = vdwg.mxu0
    %vm353 = vcmp.ge.f32.partialorder %v351, 0.0
    %v354 = vmul.f32 %v351, 0.3
    %v355 = vsel %vm353, %v351, %v354
    %356 = vst [vmem:[#allocation10] sm:$0xf] %v355
    // Predicated region
    $region34: #{tpu_custom_call.1} parent=1 // pred_check
      _
    $region35: #{tpu_custom_call.1} parent=1 // pred_check_branch
      %358 = sbr.rel (0) target = $region37
    $region36: #{tpu_custom_call.1} parent=1 // pred_region
      %360 = vsyncadd [#allocation4], 0
      %s362 = sshll.u32 [#allocation10], 4
      %s363 = int_to_ptr.vmem [resolvable:$true] %s362
      %s364 = sshll.u32 %s4, 4
      %s365 = int_to_ptr.hbm [resolvable:$true] %s364
      %367 = dma.vmem_to_hbm [thread:$0]  %s363, 64, %s365, [#allocation4]
    $region37: #{tpu_custom_call.1} parent=1 // pred_fallthru
      _
    // Predicated region
    $region38: #{tpu_custom_call.1} parent=1 // pred_check
      _
    $region39: #{tpu_custom_call.1} parent=1 // pred_check_branch
      %369 = sbr.rel (0) target = $region41
    $region40: #{tpu_custom_call.1} parent=1 // pred_region
      %371 = dma.done [#allocation4], 64
    $region41: #{tpu_custom_call.1} parent=1 // pred_fallthru
      _
    %372 = vsyncpa [#allocation3], 1
    %373 = vsyncpa [#allocation6], 1
    %374 = vsyncpa [#allocation9], 1
    %375 = vsyncpa [#allocation4], 1

</llo_original>
